<compile_context>
chip_gen: v5e
topology: v5e:2x2
jax: 0.10.0
libtpu: 0.0.40
codegen_flags: <defaults>
</compile_context>

<pallas_src>
import jax
import jax.numpy as jnp
from jax.experimental import pallas as pl
from jax.experimental.pallas import tpu as pltpu

_LANES = 128  # samples packed per block row (= output lane width)


def _linear_sigmoid_kernel(x_ref, w_ref, b_ref, o_ref):
    """sigmoid(x @ W + b) on one [rows, 256] block.

    x_ref: VMEM [rows, 256] f32 -- 128 samples per row, features interleaved
           along lanes (lane 2j = feature 0 of sample j, lane 2j+1 = feature 1).
    w_ref: VMEM [256, 128] f32  -- structured weights: w[2j, j] = w0,
           w[2j+1, j] = w1, zero elsewhere.  A single MXU matmul therefore
           performs the 2-feature contraction, the even/odd-lane deinterleave
           and the compaction to a lane-dense output in one op.
    b_ref: SMEM [1] f32
    o_ref: VMEM [rows, 128] f32 -- sample j of each row lands in lane j (dense).
    """
    z = jnp.dot(x_ref[...], w_ref[...], preferred_element_type=jnp.float32)
    o_ref[...] = jax.nn.sigmoid(z + b_ref[0])  # sigmoid on EUP; kernel stays DMA-bound


def net_forward(x, weight, bias, *, block_rows=2048):
    """Forward pass of Net: sigmoid(x @ weight.T + bias).

    x:      [N, 2] float32 (natural row-major layout; consumed copy-free when
            N is a multiple of 128, otherwise only the tail is padded)
    weight: [1, 2] float32 (PyTorch nn.Linear(2, 1).weight layout)
    bias:   [1]    float32
    returns [N, 1] float32
    """
    n = x.shape[0]
    x = x.astype(jnp.float32)

    # Pack 128 samples per row: [N, 2] -> [N/128, 256] is a FREE contiguous
    # reshape of the row-major input (no transpose, no extra HBM pass).
    n_pad = ((n + _LANES - 1) // _LANES) * _LANES
    if n_pad != n:
        # Ragged-batch fallback only; the 128-aligned path is copy-free.
        x = jnp.pad(x, ((0, n_pad - n), (0, 0)))
    r = n_pad // _LANES
    x2 = x.reshape(r, 2 * _LANES)

    # Structured (256, 128) weight matrix: even diagonal = w0, odd diagonal = w1.
    w = weight.reshape(2).astype(jnp.float32)
    eye = jnp.eye(_LANES, dtype=jnp.float32)
    w_mat = jnp.stack([w[0] * eye, w[1] * eye], axis=1).reshape(2 * _LANES, _LANES)
    b = bias.reshape(1).astype(jnp.float32)

    # Block sizing: 2048 rows/step -> ~3 MiB HBM traffic per grid step
    # (>> 0.35 us per-step overhead) and ~6.5 MiB double-buffered VMEM,
    # inside the strictest scoped-VMEM default (v5e 16 MiB, v6e/v7x 32 MiB).
    tr = min(block_rows, r)
    grid = (pl.cdiv(r, tr),)  # partial tail block is masked by Pallas

    out = pl.pallas_call(
        _linear_sigmoid_kernel,
        out_shape=jax.ShapeDtypeStruct((r, _LANES), jnp.float32),
        grid_spec=pl.GridSpec(
            grid=grid,
            in_specs=[
                pl.BlockSpec((tr, 2 * _LANES), lambda i: (i, 0)),      # x rows
                pl.BlockSpec((2 * _LANES, _LANES), lambda i: (0, 0)),  # weights (same block every step)
                pl.BlockSpec(memory_space=pltpu.MemorySpace.SMEM),     # bias scalar
            ],
            out_specs=pl.BlockSpec((tr, _LANES), lambda i: (i, 0)),
        ),
        compiler_params=pltpu.CompilerParams(
            dimension_semantics=("parallel",),  # pipeline + v7x megacore sharding
        ),
        cost_estimate=pl.CostEstimate(
            flops=2 * (2 * _LANES) * _LANES * r,          # physical MXU flops
            transcendentals=n_pad,                        # one sigmoid per sample
            bytes_accessed=12 * n_pad + 4 * 2 * _LANES * _LANES,
        ),
    )(x2, w_mat, b)

    # [r, 128] -> [N, 1] is a free contiguous reshape (sample order preserved).
    out_flat = out.reshape(n_pad, 1)
    return out_flat if n_pad == n else out_flat[:n]


if __name__ == "__main__":
    key = jax.random.PRNGKey(0)
    k_x, k_w, k_b = jax.random.split(key, 3)

    # Small shapes consistent with the module: batch=1024, in_features=2.
    x = jax.random.normal(k_x, (1024, 2), dtype=jnp.float32)
    weight = jax.random.uniform(k_w, (1, 2), dtype=jnp.float32,
                                minval=-0.7, maxval=0.7)
    bias = jax.random.uniform(k_b, (1,), dtype=jnp.float32,
                              minval=-0.7, maxval=0.7)

    fwd = jax.jit(net_forward)
    out = fwd(x, weight, bias)
    jax.block_until_ready(out)

    # Exact element-wise f32 reference (no dot, so no reference-side rounding).
    ref = jax.nn.sigmoid(x[:, 0:1] * weight[0, 0] + x[:, 1:2] * weight[0, 1] + bias[0])
    assert out.shape == (1024, 1)
    # Tolerance leaves headroom for the MXU's multi-pass f32 rounding; any
    # layout/weight-mapping bug would produce O(0.1-1) errors.
    assert jnp.allclose(out, ref, atol=1e-4), "mismatch vs reference"

    print("KERNEL_OK")
</pallas_src>

<mosaic_0001>
module attributes {stable_mosaic.version = 11 : i64} {
  func.func @_linear_sigmoid_kernel(%arg0: i32, %arg1: memref<8x256xf32, #tpu.memory_space<vmem>>, %arg2: memref<256x128xf32, #tpu.memory_space<vmem>>, %arg3: memref<1xf32, #tpu.memory_space<smem>>, %arg4: memref<8x128xf32, #tpu.memory_space<vmem>>) attributes {dimension_semantics = [#tpu.dimension_semantics<parallel>], iteration_bounds = array<i64: 1>, scalar_prefetch = 0 : i64, scratch_operands = 0 : i64, tpu.core_type = #tpu.core_type<tc>, window_params = [{transform_indices = @transform_0, window_bounds = array<i64: 8, 256>}, {pipeline_mode = #tpu.pipeline_mode<synchronous>, transform_indices = @transform_1, window_bounds = array<i64: 256, 128>}, {transform_indices = @transform_2, window_bounds = array<i64: 1>}, {transform_indices = @transform_3, window_bounds = array<i64: 8, 128>}]} {
    %c0 = arith.constant 0 : index
    %c0_0 = arith.constant 0 : index
    %0 = vector.load %arg1[%c0, %c0_0] : memref<8x256xf32, #tpu.memory_space<vmem>>, vector<8x256xf32>
    %c0_1 = arith.constant 0 : index
    %c0_2 = arith.constant 0 : index
    %1 = vector.load %arg2[%c0_1, %c0_2] : memref<256x128xf32, #tpu.memory_space<vmem>>, vector<256x128xf32>
    %cst = arith.constant dense<0.000000e+00> : vector<8x128xf32>
    %2 = tpu.matmul %0, %1, %cst {dimension_numbers = #tpu.dot_dimension_numbers<[1], [0], [0], [1], [0, 0, 1, 1], [], []>} : vector<8x256xf32>, vector<256x128xf32>, vector<8x128xf32> -> vector<8x128xf32>
    %c0_3 = arith.constant 0 : index
    %3 = memref.load %arg3[%c0_3] : memref<1xf32, #tpu.memory_space<smem>>
    %4 = vector.broadcast %3 : f32 to vector<8x128xf32>
    %5 = arith.addf %2, %4 : vector<8x128xf32>
    %6 = arith.negf %5 : vector<8x128xf32>
    %7 = math.exp %6 : vector<8x128xf32>
    %cst_4 = arith.constant 1.000000e+00 : f32
    %8 = vector.broadcast %cst_4 : f32 to vector<8x128xf32>
    %9 = arith.addf %8, %7 : vector<8x128xf32>
    %10 = arith.divf %8, %9 : vector<8x128xf32>
    %c0_5 = arith.constant 0 : index
    %c0_6 = arith.constant 0 : index
    %11 = vector.load %arg4[%c0_5, %c0_6] : memref<8x128xf32, #tpu.memory_space<vmem>>, vector<8x128xf32>
    tpu.vector_store %arg4[%c0_5, %c0_6], %10 {strides = array<i32>} : memref<8x128xf32, #tpu.memory_space<vmem>>, vector<8x128xf32>,
    return
  }
  func.func @transform_0(%arg0: i32) -> (i32, i32) {
    %c0_i32 = arith.constant 0 : i32
    %c0_i32_0 = arith.constant 0 : i32
    return %arg0, %c0_i32 : i32, i32
  }
  func.func @transform_1(%arg0: i32) -> (i32, i32) {
    %c0_i32 = arith.constant 0 : i32
    %c0_i32_0 = arith.constant 0 : i32
    %c0_i32_1 = arith.constant 0 : i32
    return %c0_i32, %c0_i32_0 : i32, i32
  }
  func.func @transform_2(%arg0: i32) -> i32 {
    %c0_i32 = arith.constant 0 : i32
    %c0_i32_0 = arith.constant 0 : i32
    return %c0_i32 : i32
  }
  func.func @transform_3(%arg0: i32) -> (i32, i32) {
    %c0_i32 = arith.constant 0 : i32
    %c0_i32_0 = arith.constant 0 : i32
    return %arg0, %c0_i32 : i32, i32
  }
}

</mosaic_0001>

<llo_original>
// kernel: net_forward.1
$region0: #{net_forward.1}
  #allocation0 [shape = 'u32[]', space=smem, size = 0x4, offset = 0x4, fixed_abs, tag = 'smem constant byte address 0x4 - core index']
  #allocation1 [shape = 'u32[72,128]{1,0:T(1,128)}', space=vmem, size = 0x9000, scoped, tag = 'internal scratch']
  #allocation2 [shape = 'f32[1]{0:T(128)S(6)}', space=smem, size = 0x200, scoped, tag = 'scoped memory for net_forward.1']
  %s0 = inlined_call_operand.vmem [shape: f32[8,256], index: 0, kind: input, shape index: {}]
  %s1 = inlined_call_operand.vmem [shape: f32[256,128], index: 1, kind: input, shape index: {}]
  %s2 = inlined_call_operand.<no memory space> [shape: f32[1], index: 2, kind: input, shape index: {}]
  %s3 = inlined_call_operand.hbm [shape: f32[8,128], index: 3, kind: output, shape index: {}]
  %s4 = sld [smem:[#allocation0]]
  $region22: #{net_forward.1} parent=0
    _
  %s6 = ssub.s32 1, %s4
  %s7 = scalar_select 0, %s6, %s4
  %8 = sst [smem:[#allocation2]] %s2
  $region1: #{net_forward.1} parent=0
    #allocation3 [shape = 'u8[4096]{0}', space=vmem, size = 0x1000, scoped, tag = 'output window, operand 0, single buffered']
    #allocation4 [shape = 's32[1]{0}', space=sflag, size = 0x4, scoped, tag = 'scoped memory for net_forward.1']
    %9 = vsyncpa [#allocation4], 0
    // Predicated region
    $region2: #{net_forward.1} parent=1 // pred_check
      _
    $region3: #{net_forward.1} parent=1 // pred_check_branch
      %11 = sbr.rel (0) target = $region5
    $region4: #{net_forward.1} parent=1 // pred_region
      _
    $region5: #{net_forward.1} parent=1 // pred_fallthru
      _
    // Predicated region
    $region6: #{net_forward.1} parent=1 // pred_check
      _
    $region7: #{net_forward.1} parent=1 // pred_check_branch
      %13 = sbr.rel (0) target = $region9
    $region8: #{net_forward.1} parent=1 // pred_region
      _
    $region9: #{net_forward.1} parent=1 // pred_fallthru
      _
    // Predicated region
    $region10: #{net_forward.1} parent=1 // pred_check
      _
    $region11: #{net_forward.1} parent=1 // pred_check_branch
      %15 = sbr.rel (0) target = $region13
    $region12: #{net_forward.1} parent=1 // pred_region
      _
    $region13: #{net_forward.1} parent=1 // pred_fallthru
      _
    %v16 = vld [vmem:[%s0] sm:$0xff]
    %v17 = vld [vmem:[%s0 + $0x8] sm:$0xff]
    %v18 = vld [vmem:[%s1] sm:$0xff]
    %v19 = vld [vmem:[%s1 + $0x8] sm:$0xff]
    %v20 = vld [vmem:[%s1 + $0x10] sm:$0xff]
    %v21 = vld [vmem:[%s1 + $0x18] sm:$0xff]
    %v22 = vld [vmem:[%s1 + $0x20] sm:$0xff]
    %v23 = vld [vmem:[%s1 + $0x28] sm:$0xff]
    %v24 = vld [vmem:[%s1 + $0x30] sm:$0xff]
    %v25 = vld [vmem:[%s1 + $0x38] sm:$0xff]
    %v26 = vld [vmem:[%s1 + $0x40] sm:$0xff]
    %v27 = vld [vmem:[%s1 + $0x48] sm:$0xff]
    %v28 = vld [vmem:[%s1 + $0x50] sm:$0xff]
    %v29 = vld [vmem:[%s1 + $0x58] sm:$0xff]
    %v30 = vld [vmem:[%s1 + $0x60] sm:$0xff]
    %v31 = vld [vmem:[%s1 + $0x68] sm:$0xff]
    %v32 = vld [vmem:[%s1 + $0x70] sm:$0xff]
    %v33 = vld [vmem:[%s1 + $0x78] sm:$0xff]
    %v34 = vld [vmem:[%s1 + $0x80] sm:$0xff]
    %v35 = vld [vmem:[%s1 + $0x88] sm:$0xff]
    %v36 = vld [vmem:[%s1 + $0x90] sm:$0xff]
    %v37 = vld [vmem:[%s1 + $0x98] sm:$0xff]
    %v38 = vld [vmem:[%s1 + $0xa0] sm:$0xff]
    %v39 = vld [vmem:[%s1 + $0xa8] sm:$0xff]
    %v40 = vld [vmem:[%s1 + $0xb0] sm:$0xff]
    %v41 = vld [vmem:[%s1 + $0xb8] sm:$0xff]
    %v42 = vld [vmem:[%s1 + $0xc0] sm:$0xff]
    %v43 = vld [vmem:[%s1 + $0xc8] sm:$0xff]
    %v44 = vld [vmem:[%s1 + $0xd0] sm:$0xff]
    %v45 = vld [vmem:[%s1 + $0xd8] sm:$0xff]
    %v46 = vld [vmem:[%s1 + $0xe0] sm:$0xff]
    %v47 = vld [vmem:[%s1 + $0xe8] sm:$0xff]
    %v48 = vld [vmem:[%s1 + $0xf0] sm:$0xff]
    %v49 = vld [vmem:[%s1 + $0xf8] sm:$0xff]
    %s50 = sld [smem:[#allocation2]]
    %v51 = vstv %s50
    %52 = vmatpush.msra.mxu0 %v33
    %53 = vmatpush.msra.mxu0 %v32
    %54 = vmatpush.msra.mxu0 %v31
    %55 = vmatpush.msra.mxu0 %v30
    %56 = vmatpush.msra.mxu0 %v29
    %57 = vmatpush.msra.mxu0 %v28
    %58 = vmatpush.msra.mxu0 %v27
    %59 = vmatpush.msra.mxu0 %v26
    %60 = vmatpush.msra.mxu0 %v25
    %61 = vmatpush.msra.mxu0 %v24
    %62 = vmatpush.msra.mxu0 %v23
    %63 = vmatpush.msra.mxu0 %v22
    %64 = vmatpush.msra.mxu0 %v21
    %65 = vmatpush.msra.mxu0 %v20
    %66 = vmatpush.msra.mxu0 %v19
    %67 = vmatpush.msra.mxu0 %v18
    %68 = vmatmul.f32.gmra.mxu0 %v16
    %v69 = vpop.f32.mrf.mxu0
    %v70 = vadd.f32 %v51, %v69
    %71 = vdwg.mxu0
    %72 = vmatpush.msra.mxu0 %v49
    %73 = vmatpush.msra.mxu0 %v48
    %74 = vmatpush.msra.mxu0 %v47
    %75 = vmatpush.msra.mxu0 %v46
    %76 = vmatpush.msra.mxu0 %v45
    %77 = vmatpush.msra.mxu0 %v44
    %78 = vmatpush.msra.mxu0 %v43
    %79 = vmatpush.msra.mxu0 %v42
    %80 = vmatpush.msra.mxu0 %v41
    %81 = vmatpush.msra.mxu0 %v40
    %82 = vmatpush.msra.mxu0 %v39
    %83 = vmatpush.msra.mxu0 %v38
    %84 = vmatpush.msra.mxu0 %v37
    %85 = vmatpush.msra.mxu0 %v36
    %86 = vmatpush.msra.mxu0 %v35
    %87 = vmatpush.msra.mxu0 %v34
    %88 = vmatmul.f32.gmra.mxu0 %v17
    %v89 = vpop.f32.mrf.mxu0
    %v90 = vadd.f32 %v70, %v89
    %91 = vdwg.mxu0
    %v92 = vxor.u32 %v90, 2147483648
    %v93 = vmul.f32 %v92, 1.442695
    %v94 = vpow.pop %v93
    %v95 = vadd.f32 %v94, 1.0
    %v96 = vrcp.pop %v95
    %v97 = vmul.f32 %v95, %v96
    %v98 = vsub.f32 1.0, %v97
    %v99 = vmul.f32 %v96, %v98
    %v100 = vadd.f32 %v96, %v99
    %vm101 = vweird.f32 %v95
    %vm102 = vweird.f32 %v96
    %vm103 = vmor %vm101, %vm102
    %v104 = vsel %vm103, %v96, %v100
    %v105 = vand.u32 2147483647, %v95
    %vm106 = vcmp.eq.f32.partialorder %v105, 8.507059e+37
    %v107 = vand.u32 %v95, 2147483648
    %v108 = vor.u32 1.1754944e-38, %v107
    %v109 = vsel %vm106, %v108, %v104
    %v110 = vmul.f32 1.0, %v109
    %111 = vst [vmem:[#allocation3] sm:$0xff] %v110
    // Predicated region
    $region14: #{net_forward.1} parent=1 // pred_check
      _
    $region15: #{net_forward.1} parent=1 // pred_check_branch
      %113 = sbr.rel (0) target = $region17
    $region16: #{net_forward.1} parent=1 // pred_region
      %115 = vsyncadd [#allocation4], 0
      %s117 = sshll.u32 [#allocation3], 4
      %s118 = int_to_ptr.vmem [resolvable:$true] %s117
      %s119 = sshll.u32 %s3, 4
      %s120 = int_to_ptr.hbm [resolvable:$true] %s119
      %122 = dma.vmem_to_hbm [thread:$0]  %s118, 128, %s120, [#allocation4]
    $region17: #{net_forward.1} parent=1 // pred_fallthru
      _
    // Predicated region
    $region18: #{net_forward.1} parent=1 // pred_check
      _
    $region19: #{net_forward.1} parent=1 // pred_check_branch
      %124 = sbr.rel (0) target = $region21
    $region20: #{net_forward.1} parent=1 // pred_region
      %126 = dma.done [#allocation4], 128
    $region21: #{net_forward.1} parent=1 // pred_fallthru
      _
    %127 = vsyncpa [#allocation4], 1

</llo_original>
